<compile_context>
chip_gen: v7x
topology: tpu7x:2x2x1
jax: 0.10.0
libtpu: 0.0.40
codegen_flags: <defaults>
</compile_context>

<pallas_src>
import functools
import math

import jax
import jax.numpy as jnp
from jax.experimental import pallas as pl
from jax.experimental.pallas import tpu as pltpu

_LANE = 128  # vreg lane width (last dim)


def _round_up(x, m):
    return ((x + m - 1) // m) * m


def _sublane(dtype):
    """Rows per vreg tile: 8 for 32-bit, 16 for bf16/f16, 32 for int8/fp8."""
    return 8 * max(1, 4 // jnp.dtype(dtype).itemsize)


def _vmem_budget_bytes():
    """~85% of physical VMEM; conservative (v7x-sized) fallback if unknown."""
    cap = 64 << 20
    try:
        info = pltpu.get_tpu_info()
        cap = int(getattr(info, "vmem_capacity_bytes", cap))
    except Exception:
        pass
    return (cap * 85) // 100


def _fused_mlp_kernel(x_ref, *refs, num_layers, apply_relu):
    """refs = (w0, b0, w1, b1, ..., w_{L-1}, b_{L-1}, o_ref).

    Runs the whole MLP for one batch tile.  Intermediates never leave the
    core: every layer is a full-tile MXU matmul with f32 accumulation followed
    by an f32 bias-add / ReLU epilogue on the VPU.
    """
    o_ref = refs[-1]
    h = x_ref[...]
    for layer in range(num_layers):
        w = refs[2 * layer][...]
        b = refs[2 * layer + 1][...]          # (1, N), f32
        h = jnp.dot(h.astype(w.dtype), w, preferred_element_type=jnp.float32)
        h = h + b.astype(jnp.float32)         # broadcast over the batch tile
        if apply_relu:
            h = jnp.maximum(h, 0.0)
    o_ref[...] = h.astype(o_ref.dtype)


def fused_mlp(x, params, *, act=True, block_m=512, compute_dtype=None,
              out_dtype=None):
    """Run the whole MLP (list of (w, b) layers) in ONE pallas_call.

    x:      (M, sizes[0])
    params: [(w_i of shape (K_i, N_i), b_i of shape (N_i,)), ...]
    compute_dtype: optional matmul-input dtype (e.g. jnp.bfloat16 on v6e/v7x
                   for ~4x MXU throughput and half the weight residency);
                   accumulation and the bias/ReLU epilogue are always f32.
                   Default None keeps exact f32.
    """
    if out_dtype is None:
        out_dtype = x.dtype
    out_dtype = jnp.dtype(out_dtype)
    num_layers = len(params)
    assert num_layers >= 1

    M, K0 = x.shape
    sizes = [K0] + [w.shape[1] for (w, _) in params]
    for li, (w, _) in enumerate(params):
        assert w.shape[0] == sizes[li], (w.shape, sizes[li])

    # Lane-dense padded feature sizes (multiples of 128).
    padded = [_round_up(s, _LANE) for s in sizes]

    w_dtype = (jnp.dtype(compute_dtype) if compute_dtype is not None
               else jnp.dtype(x.dtype))
    sub = max(_sublane(w_dtype), _sublane(out_dtype))

    # --- pack (pad + cast) the resident weights / biases; biases stay f32 ---
    packed = []
    resident_bytes = 0
    for li, (w, b) in enumerate(params):
        kp, np_ = padded[li], padded[li + 1]
        w_p = jnp.pad(w.astype(w_dtype),
                      ((0, kp - w.shape[0]), (0, np_ - w.shape[1])))
        b_p = jnp.pad(b.astype(jnp.float32).reshape(1, -1),
                      ((0, 0), (0, np_ - b.shape[0])))
        packed += [w_p, b_p]
        resident_bytes += (w_p.size * w_p.dtype.itemsize
                           + b_p.size * b_p.dtype.itemsize)

    budget = _vmem_budget_bytes()

    def tile_bytes(tm, weight_buffers):
        return (2 * tm * padded[0] * w_dtype.itemsize        # x tile (dbl-buf)
                + 2 * tm * padded[-1] * out_dtype.itemsize   # out tile (dbl-buf)
                + weight_buffers * resident_bytes            # resident weights
                + 2 * tm * max(padded) * 4                   # f32 intermediates
                + (4 << 20))                                  # spill/scratch headroom

    # Guard: weights must be VMEM-resident for this fused strategy.
    # TODO(synk): N/K-tile the weights (grid over N + K "arbitrary" reduction
    # axis with an f32 VMEM accumulator) instead of this plain-JAX fallback.
    if tile_bytes(sub, 1) > budget:
        h = x
        for (w, b) in params:
            h = h @ w + b[None, :]
            if act:
                h = jnp.maximum(h, 0.0)
        return h.astype(out_dtype)

    # --- choose batch tile: largest that fits the VMEM budget ---
    tm = min(_round_up(block_m, sub), _round_up(max(M, sub), sub))
    while tm > sub and tile_bytes(tm, 1) > budget:
        tm = _round_up(tm // 2, sub)
    # Give megacore (v7x: 2 TCs) at least two batch tiles to shard.
    if _round_up(max(M, sub), tm) // tm < 2 and M > sub:
        tm = max(sub, _round_up(pl.cdiv(M, 2), sub))
    m_pad = _round_up(max(M, sub), tm)
    grid = (m_pad // tm,)

    # Pad (and optionally cast) the activation input.
    x_p = jnp.pad(x.astype(w_dtype), ((0, m_pad - M), (0, padded[0] - K0)))

    out_specs = pl.BlockSpec((tm, padded[-1]), lambda i: (i, 0))
    out_shape = jax.ShapeDtypeStruct((m_pad, padded[-1]), out_dtype)

    # Advisory cost estimate for the XLA scheduler.
    flops = sum(2 * m_pad * padded[li] * padded[li + 1]
                for li in range(num_layers))
    bytes_accessed = (x_p.size * x_p.dtype.itemsize
                      + resident_bytes
                      + m_pad * padded[-1] * out_dtype.itemsize)
    cost = pl.CostEstimate(flops=flops, transcendentals=0,
                           bytes_accessed=bytes_accessed)

    kernel = functools.partial(_fused_mlp_kernel,
                               num_layers=num_layers, apply_relu=bool(act))

    def _make_in_specs(single_buffer_weights):
        specs = [pl.BlockSpec((tm, padded[0]), lambda i: (i, 0))]
        for li in range(num_layers):
            kp, np_ = padded[li], padded[li + 1]
            if single_buffer_weights:
                # Constant index_map -> no benefit from double-buffering;
                # single-buffering halves the resident weight footprint.
                specs.append(pl.BlockSpec((kp, np_), lambda i: (0, 0),
                                          pipeline_mode=pl.Buffered(1)))
                specs.append(pl.BlockSpec((1, np_), lambda i: (0, 0),
                                          pipeline_mode=pl.Buffered(1)))
            else:
                specs.append(pl.BlockSpec((kp, np_), lambda i: (0, 0)))
                specs.append(pl.BlockSpec((1, np_), lambda i: (0, 0)))
        return specs

    def _call(single_buffer_weights):
        wb = 1 if single_buffer_weights else 2
        vmem_limit = int(min(max(tile_bytes(tm, wb), 8 << 20), budget))
        return pl.pallas_call(
            kernel,
            out_shape=out_shape,
            grid=grid,
            in_specs=_make_in_specs(single_buffer_weights),
            out_specs=out_specs,
            compiler_params=pltpu.CompilerParams(
                dimension_semantics=("parallel",),
                vmem_limit_bytes=vmem_limit),
            cost_estimate=cost,
        )(x_p, *packed)

    try:
        out = _call(True)      # preferred: single-buffered resident weights
    except Exception:
        out = _call(False)     # safe fallback: default double-buffering

    # Strip batch/feature padding only when present (the padded store itself
    # stays lane-dense; this slice is a one-time copy off the hot path).
    if m_pad == M and padded[-1] == sizes[-1]:
        return out
    return out[:M, :sizes[-1]]


class MLPPallas:
    """Mirror of pragmatic_speaker MLP: for each consecutive (sizes[i],
    sizes[i+1]) pair, Linear(bias=True) followed by ReLU (the activation is
    applied after EVERY Linear, including the last, matching the PyTorch
    module's construction loop)."""

    def __init__(self, sizes, key, bias=True, act=True, dtype=jnp.float32,
                 compute_dtype=None):
        self.sizes = tuple(sizes)
        self.act = bool(act)
        self.compute_dtype = compute_dtype
        self.params = []
        for i in range(len(sizes) - 1):
            key, kw, kb = jax.random.split(key, 3)
            fan_in, fan_out = sizes[i], sizes[i + 1]
            bound = 1.0 / math.sqrt(fan_in)   # PyTorch-Linear-style uniform init
            w = jax.random.uniform(kw, (fan_in, fan_out), dtype, -bound, bound)
            if bias:
                b = jax.random.uniform(kb, (fan_out,), dtype, -bound, bound)
            else:
                b = jnp.zeros((fan_out,), dtype)
            self.params.append((w, b))

    def __call__(self, x):
        return fused_mlp(x, self.params, act=self.act,
                         compute_dtype=self.compute_dtype)


def mlp_reference(x, params, act=True):
    """Plain-JAX reference for correctness checking."""
    for (w, b) in params:
        x = x @ w + b[None, :]
        if act:
            x = jnp.maximum(x, 0.0)
    return x


if __name__ == "__main__":
    key = jax.random.PRNGKey(0)
    k_in, k_params = jax.random.split(key)

    # Small, MLP-consistent shapes: batch=8, sizes=[32, 64, 32].
    batch = 8
    sizes = [32, 64, 32]

    x = jax.random.normal(k_in, (batch, sizes[0]), jnp.float32)

    mlp = MLPPallas(sizes, k_params, bias=True, act=True)

    out = mlp(x)
    out = jax.block_until_ready(out)

    ref = mlp_reference(x, mlp.params, act=True)
    assert out.shape == (batch, sizes[-1]), out.shape
    assert jnp.allclose(out, ref, atol=1e-5, rtol=1e-5), "mismatch vs reference"

    print("KERNEL_OK")
</pallas_src>

<mosaic_0001>
module attributes {stable_mosaic.version = 11 : i64} {
  func.func @_fused_mlp_kernel(%arg0: i32, %arg1: memref<8x128xf32, #tpu.memory_space<vmem>>, %arg2: memref<128x128xf32, #tpu.memory_space<vmem>>, %arg3: memref<1x128xf32, #tpu.memory_space<vmem>>, %arg4: memref<128x128xf32, #tpu.memory_space<vmem>>, %arg5: memref<1x128xf32, #tpu.memory_space<vmem>>, %arg6: memref<8x128xf32, #tpu.memory_space<vmem>>) attributes {dimension_semantics = [#tpu.dimension_semantics<parallel>], iteration_bounds = array<i64: 1>, scalar_prefetch = 0 : i64, scratch_operands = 0 : i64, tpu.core_type = #tpu.core_type<tc>, window_params = [{transform_indices = @transform_0, window_bounds = array<i64: 8, 128>}, {pipeline_mode = #tpu.pipeline_mode<synchronous>, transform_indices = @transform_1, window_bounds = array<i64: 128, 128>}, {pipeline_mode = #tpu.pipeline_mode<synchronous>, transform_indices = @transform_2, window_bounds = array<i64: 1, 128>}, {pipeline_mode = #tpu.pipeline_mode<synchronous>, transform_indices = @transform_3, window_bounds = array<i64: 128, 128>}, {pipeline_mode = #tpu.pipeline_mode<synchronous>, transform_indices = @transform_4, window_bounds = array<i64: 1, 128>}, {transform_indices = @transform_5, window_bounds = array<i64: 8, 128>}]} {
    %c0 = arith.constant 0 : index
    %c0_0 = arith.constant 0 : index
    %0 = vector.load %arg1[%c0, %c0_0] : memref<8x128xf32, #tpu.memory_space<vmem>>, vector<8x128xf32>
    %c0_1 = arith.constant 0 : index
    %c0_2 = arith.constant 0 : index
    %1 = vector.load %arg2[%c0_1, %c0_2] : memref<128x128xf32, #tpu.memory_space<vmem>>, vector<128x128xf32>
    %c0_3 = arith.constant 0 : index
    %c0_4 = arith.constant 0 : index
    %2 = vector.load %arg3[%c0_3, %c0_4] : memref<1x128xf32, #tpu.memory_space<vmem>>, vector<1x128xf32>
    %cst = arith.constant dense<0.000000e+00> : vector<8x128xf32>
    %3 = tpu.matmul %0, %1, %cst {dimension_numbers = #tpu.dot_dimension_numbers<[1], [0], [0], [1], [0, 0, 1, 1], [], []>} : vector<8x128xf32>, vector<128x128xf32>, vector<8x128xf32> -> vector<8x128xf32>
    %4 = vector.broadcast %2 : vector<1x128xf32> to vector<8x128xf32>
    %5 = arith.addf %3, %4 : vector<8x128xf32>
    %cst_5 = arith.constant 0.000000e+00 : f32
    %6 = vector.broadcast %cst_5 : f32 to vector<8x128xf32>
    %7 = arith.maximumf %5, %6 : vector<8x128xf32>
    %c0_6 = arith.constant 0 : index
    %c0_7 = arith.constant 0 : index
    %8 = vector.load %arg4[%c0_6, %c0_7] : memref<128x128xf32, #tpu.memory_space<vmem>>, vector<128x128xf32>
    %c0_8 = arith.constant 0 : index
    %c0_9 = arith.constant 0 : index
    %9 = vector.load %arg5[%c0_8, %c0_9] : memref<1x128xf32, #tpu.memory_space<vmem>>, vector<1x128xf32>
    %cst_10 = arith.constant dense<0.000000e+00> : vector<8x128xf32>
    %10 = tpu.matmul %7, %8, %cst_10 {dimension_numbers = #tpu.dot_dimension_numbers<[1], [0], [0], [1], [0, 0, 1, 1], [], []>} : vector<8x128xf32>, vector<128x128xf32>, vector<8x128xf32> -> vector<8x128xf32>
    %11 = vector.broadcast %9 : vector<1x128xf32> to vector<8x128xf32>
    %12 = arith.addf %10, %11 : vector<8x128xf32>
    %cst_11 = arith.constant 0.000000e+00 : f32
    %13 = vector.broadcast %cst_11 : f32 to vector<8x128xf32>
    %14 = arith.maximumf %12, %13 : vector<8x128xf32>
    %c0_12 = arith.constant 0 : index
    %c0_13 = arith.constant 0 : index
    %15 = vector.load %arg6[%c0_12, %c0_13] : memref<8x128xf32, #tpu.memory_space<vmem>>, vector<8x128xf32>
    tpu.vector_store %arg6[%c0_12, %c0_13], %14 {strides = array<i32>} : memref<8x128xf32, #tpu.memory_space<vmem>>, vector<8x128xf32>,
    return
  }
  func.func @transform_0(%arg0: i32) -> (i32, i32) {
    %c0_i32 = arith.constant 0 : i32
    %c0_i32_0 = arith.constant 0 : i32
    return %arg0, %c0_i32 : i32, i32
  }
  func.func @transform_1(%arg0: i32) -> (i32, i32) {
    %c0_i32 = arith.constant 0 : i32
    %c0_i32_0 = arith.constant 0 : i32
    %c0_i32_1 = arith.constant 0 : i32
    return %c0_i32, %c0_i32_0 : i32, i32
  }
  func.func @transform_2(%arg0: i32) -> (i32, i32) {
    %c0_i32 = arith.constant 0 : i32
    %c0_i32_0 = arith.constant 0 : i32
    %c0_i32_1 = arith.constant 0 : i32
    return %c0_i32, %c0_i32_0 : i32, i32
  }
  func.func @transform_3(%arg0: i32) -> (i32, i32) {
    %c0_i32 = arith.constant 0 : i32
    %c0_i32_0 = arith.constant 0 : i32
    %c0_i32_1 = arith.constant 0 : i32
    return %c0_i32, %c0_i32_0 : i32, i32
  }
  func.func @transform_4(%arg0: i32) -> (i32, i32) {
    %c0_i32 = arith.constant 0 : i32
    %c0_i32_0 = arith.constant 0 : i32
    %c0_i32_1 = arith.constant 0 : i32
    return %c0_i32, %c0_i32_0 : i32, i32
  }
  func.func @transform_5(%arg0: i32) -> (i32, i32) {
    %c0_i32 = arith.constant 0 : i32
    %c0_i32_0 = arith.constant 0 : i32
    return %arg0, %c0_i32 : i32, i32
  }
}

module attributes {stable_mosaic.version = 11 : i64} {
  func.func @_fused_mlp_kernel(%arg0: i32, %arg1: memref<8x128xf32, #tpu.memory_space<vmem>>, %arg2: memref<128x128xf32, #tpu.memory_space<vmem>>, %arg3: memref<1x128xf32, #tpu.memory_space<vmem>>, %arg4: memref<128x128xf32, #tpu.memory_space<vmem>>, %arg5: memref<1x128xf32, #tpu.memory_space<vmem>>, %arg6: memref<8x128xf32, #tpu.memory_space<vmem>>) attributes {dimension_semantics = [#tpu.dimension_semantics<parallel>], iteration_bounds = array<i64: 1>, scalar_prefetch = 0 : i64, scratch_operands = 0 : i64, tpu.core_type = #tpu.core_type<tc>, window_params = [{transform_indices = @transform_0, window_bounds = array<i64: 8, 128>}, {pipeline_mode = #tpu.pipeline_mode<synchronous>, transform_indices = @transform_1, window_bounds = array<i64: 128, 128>}, {pipeline_mode = #tpu.pipeline_mode<synchronous>, transform_indices = @transform_2, window_bounds = array<i64: 1, 128>}, {pipeline_mode = #tpu.pipeline_mode<synchronous>, transform_indices = @transform_3, window_bounds = array<i64: 128, 128>}, {pipeline_mode = #tpu.pipeline_mode<synchronous>, transform_indices = @transform_4, window_bounds = array<i64: 1, 128>}, {transform_indices = @transform_5, window_bounds = array<i64: 8, 128>}]} {
    %c0 = arith.constant 0 : index
    %c0_0 = arith.constant 0 : index
    %0 = vector.load %arg1[%c0, %c0_0] : memref<8x128xf32, #tpu.memory_space<vmem>>, vector<8x128xf32>
    %c0_1 = arith.constant 0 : index
    %c0_2 = arith.constant 0 : index
    %1 = vector.load %arg2[%c0_1, %c0_2] : memref<128x128xf32, #tpu.memory_space<vmem>>, vector<128x128xf32>
    %c0_3 = arith.constant 0 : index
    %c0_4 = arith.constant 0 : index
    %2 = vector.load %arg3[%c0_3, %c0_4] : memref<1x128xf32, #tpu.memory_space<vmem>>, vector<1x128xf32>
    %cst = arith.constant dense<0.000000e+00> : vector<8x128xf32>
    %3 = tpu.matmul %0, %1, %cst {dimension_numbers = #tpu.dot_dimension_numbers<[1], [0], [0], [1], [0, 0, 1, 1], [], []>} : vector<8x128xf32>, vector<128x128xf32>, vector<8x128xf32> -> vector<8x128xf32>
    %4 = vector.broadcast %2 : vector<1x128xf32> to vector<8x128xf32>
    %5 = arith.addf %3, %4 : vector<8x128xf32>
    %cst_5 = arith.constant 0.000000e+00 : f32
    %6 = vector.broadcast %cst_5 : f32 to vector<8x128xf32>
    %7 = arith.maximumf %5, %6 : vector<8x128xf32>
    %c0_6 = arith.constant 0 : index
    %c0_7 = arith.constant 0 : index
    %8 = vector.load %arg4[%c0_6, %c0_7] : memref<128x128xf32, #tpu.memory_space<vmem>>, vector<128x128xf32>
    %c0_8 = arith.constant 0 : index
    %c0_9 = arith.constant 0 : index
    %9 = vector.load %arg5[%c0_8, %c0_9] : memref<1x128xf32, #tpu.memory_space<vmem>>, vector<1x128xf32>
    %cst_10 = arith.constant dense<0.000000e+00> : vector<8x128xf32>
    %10 = tpu.matmul %7, %8, %cst_10 {dimension_numbers = #tpu.dot_dimension_numbers<[1], [0], [0], [1], [0, 0, 1, 1], [], []>} : vector<8x128xf32>, vector<128x128xf32>, vector<8x128xf32> -> vector<8x128xf32>
    %11 = vector.broadcast %9 : vector<1x128xf32> to vector<8x128xf32>
    %12 = arith.addf %10, %11 : vector<8x128xf32>
    %cst_11 = arith.constant 0.000000e+00 : f32
    %13 = vector.broadcast %cst_11 : f32 to vector<8x128xf32>
    %14 = arith.maximumf %12, %13 : vector<8x128xf32>
    %c0_12 = arith.constant 0 : index
    %c0_13 = arith.constant 0 : index
    %15 = vector.load %arg6[%c0_12, %c0_13] : memref<8x128xf32, #tpu.memory_space<vmem>>, vector<8x128xf32>
    tpu.vector_store %arg6[%c0_12, %c0_13], %14 {strides = array<i32>} : memref<8x128xf32, #tpu.memory_space<vmem>>, vector<8x128xf32>,
    return
  }
  func.func @transform_0(%arg0: i32) -> (i32, i32) {
    %c0_i32 = arith.constant 0 : i32
    %c0_i32_0 = arith.constant 0 : i32
    return %arg0, %c0_i32 : i32, i32
  }
  func.func @transform_1(%arg0: i32) -> (i32, i32) {
    %c0_i32 = arith.constant 0 : i32
    %c0_i32_0 = arith.constant 0 : i32
    %c0_i32_1 = arith.constant 0 : i32
    return %c0_i32, %c0_i32_0 : i32, i32
  }
  func.func @transform_2(%arg0: i32) -> (i32, i32) {
    %c0_i32 = arith.constant 0 : i32
    %c0_i32_0 = arith.constant 0 : i32
    %c0_i32_1 = arith.constant 0 : i32
    return %c0_i32, %c0_i32_0 : i32, i32
  }
  func.func @transform_3(%arg0: i32) -> (i32, i32) {
    %c0_i32 = arith.constant 0 : i32
    %c0_i32_0 = arith.constant 0 : i32
    %c0_i32_1 = arith.constant 0 : i32
    return %c0_i32, %c0_i32_0 : i32, i32
  }
  func.func @transform_4(%arg0: i32) -> (i32, i32) {
    %c0_i32 = arith.constant 0 : i32
    %c0_i32_0 = arith.constant 0 : i32
    %c0_i32_1 = arith.constant 0 : i32
    return %c0_i32, %c0_i32_0 : i32, i32
  }
  func.func @transform_5(%arg0: i32) -> (i32, i32) {
    %c0_i32 = arith.constant 0 : i32
    %c0_i32_0 = arith.constant 0 : i32
    return %arg0, %c0_i32 : i32, i32
  }
}

</mosaic_0001>

<llo_original>
// kernel: tpu_custom_call.1
$region0: #{tpu_custom_call.1}
  #allocation0 [shape = 'u32[]', space=smem, size = 0x4, offset = 0x4, fixed_abs, tag = 'smem constant byte address 0x4 - core index']
  #allocation1 [shape = 'u32[144,128]{1,0:T(1,128)}', space=vmem, size = 0x12000, scoped, tag = 'internal scratch']
  %s0 = inlined_call_operand.hbm [shape: f32[8,128], index: 0, kind: input, shape index: {}]
  %s1 = inlined_call_operand.hbm [shape: f32[128,128], index: 1, kind: input, shape index: {}]
  %s2 = inlined_call_operand.vmem [shape: f32[1,128], index: 2, kind: input, shape index: {}]
  %s3 = inlined_call_operand.hbm [shape: f32[128,128], index: 3, kind: input, shape index: {}]
  %s4 = inlined_call_operand.vmem [shape: f32[1,128], index: 4, kind: input, shape index: {}]
  %s5 = inlined_call_operand.hbm [shape: f32[8,128], index: 5, kind: output, shape index: {}]
  %s6 = sld [smem:[#allocation0]]
  $region42: #{tpu_custom_call.1} parent=0
    _
  %s8 = ssub.s32 1, %s6
  %s9 = scalar_select 0, %s8, %s6
  $region1: #{tpu_custom_call.1} parent=0
    #allocation2 [shape = 'u8[4096]{0}', space=vmem, size = 0x1000, scoped, tag = 'input window, operand 0, single buffered']
    #allocation3 [shape = 's32[1]{0}', space=sflag, size = 0x4, scoped, tag = 'scoped memory for tpu_custom_call.1']
    #allocation4 [shape = 's32[1]{0}', space=sflag, size = 0x4, scoped, tag = 'scoped memory for tpu_custom_call.1']
    #allocation5 [shape = 'u8[65536]{0}', space=vmem, size = 0x10000, scoped, tag = 'input window, operand 1, single buffered']
    #allocation6 [shape = 's32[1]{0}', space=sflag, size = 0x4, scoped, tag = 'scoped memory for tpu_custom_call.1']
    #allocation7 [shape = 'u8[65536]{0}', space=vmem, size = 0x10000, scoped, tag = 'input window, operand 3, single buffered']
    #allocation8 [shape = 'u8[4096]{0}', space=vmem, size = 0x1000, scoped, tag = 'output window, operand 0, single buffered']
    %10 = vsyncpa [#allocation3], 0
    %11 = vsyncpa [#allocation6], 0
    %12 = vsyncpa [#allocation4], 0
    // Predicated region
    $region2: #{tpu_custom_call.1} parent=1 // pred_check
      _
    $region3: #{tpu_custom_call.1} parent=1 // pred_check_branch
      %14 = sbr.rel (0) target = $region5
    $region4: #{tpu_custom_call.1} parent=1 // pred_region
      %s16 = ssub.s32 128, 128
      %17 = vsyncadd [#allocation3], %s16
      %s19 = sshll.u32 [#allocation2], 4
      %s20 = int_to_ptr.vmem [resolvable:$true] %s19
      %22 = dma.hbm_to_vmem [thread:$0]  %s0, 128, %s20, [#allocation3]
    $region5: #{tpu_custom_call.1} parent=1 // pred_fallthru
      _
    // Predicated region
    $region6: #{tpu_custom_call.1} parent=1 // pred_check
      _
    $region7: #{tpu_custom_call.1} parent=1 // pred_check_branch
      %24 = sbr.rel (0) target = $region9
    $region8: #{tpu_custom_call.1} parent=1 // pred_region
      %s26 = ssub.s32 2048, 2048
      %27 = vsyncadd [#allocation6], %s26
      %s28 = sshll.u32 [#allocation5], 4
      %s29 = int_to_ptr.vmem [resolvable:$true] %s28
      %34 = dma.hbm_to_vmem [thread:$0]  %s1, 2048, %s29, [#allocation6], 128, 128, 8
    $region9: #{tpu_custom_call.1} parent=1 // pred_fallthru
      _
    // Predicated region
    $region10: #{tpu_custom_call.1} parent=1 // pred_check
      _
    $region11: #{tpu_custom_call.1} parent=1 // pred_check_branch
      %36 = sbr.rel (0) target = $region13
    $region12: #{tpu_custom_call.1} parent=1 // pred_region
      _
    $region13: #{tpu_custom_call.1} parent=1 // pred_fallthru
      _
    // Predicated region
    $region14: #{tpu_custom_call.1} parent=1 // pred_check
      _
    $region15: #{tpu_custom_call.1} parent=1 // pred_check_branch
      %38 = sbr.rel (0) target = $region17
    $region16: #{tpu_custom_call.1} parent=1 // pred_region
      %s40 = ssub.s32 2048, 2048
      %41 = vsyncadd [#allocation6], %s40
      %s42 = sshll.u32 [#allocation7], 4
      %s43 = int_to_ptr.vmem [resolvable:$true] %s42
      %48 = dma.hbm_to_vmem [thread:$0]  %s3, 2048, %s43, [#allocation6], 128, 128, 8
    $region17: #{tpu_custom_call.1} parent=1 // pred_fallthru
      _
    // Predicated region
    $region18: #{tpu_custom_call.1} parent=1 // pred_check
      _
    $region19: #{tpu_custom_call.1} parent=1 // pred_check_branch
      %50 = sbr.rel (0) target = $region21
    $region20: #{tpu_custom_call.1} parent=1 // pred_region
      _
    $region21: #{tpu_custom_call.1} parent=1 // pred_fallthru
      _
    // Predicated region
    $region22: #{tpu_custom_call.1} parent=1 // pred_check
      _
    $region23: #{tpu_custom_call.1} parent=1 // pred_check_branch
      %52 = sbr.rel (0) target = $region25
    $region24: #{tpu_custom_call.1} parent=1 // pred_region
      %53 = dma.done [#allocation3], 128
    $region25: #{tpu_custom_call.1} parent=1 // pred_fallthru
      _
    // Predicated region
    $region26: #{tpu_custom_call.1} parent=1 // pred_check
      _
    $region27: #{tpu_custom_call.1} parent=1 // pred_check_branch
      %55 = sbr.rel (0) target = $region29
    $region28: #{tpu_custom_call.1} parent=1 // pred_region
      %56 = dma.done [#allocation6], 2048
    $region29: #{tpu_custom_call.1} parent=1 // pred_fallthru
      _
    // Predicated region
    $region30: #{tpu_custom_call.1} parent=1 // pred_check
      _
    $region31: #{tpu_custom_call.1} parent=1 // pred_check_branch
      %58 = sbr.rel (0) target = $region33
    $region32: #{tpu_custom_call.1} parent=1 // pred_region
      %59 = dma.done [#allocation6], 2048
    $region33: #{tpu_custom_call.1} parent=1 // pred_fallthru
      _
    %v60 = vld [vmem:[#allocation2] sm:$0xff]
    %v61 = vld [vmem:[#allocation5] sm:$0xff]
    %v62 = vld [vmem:[#allocation5 + $0x8] sm:$0xff]
    %v63 = vld [vmem:[#allocation5 + $0x10] sm:$0xff]
    %v64 = vld [vmem:[#allocation5 + $0x18] sm:$0xff]
    %v65 = vld [vmem:[#allocation5 + $0x20] sm:$0xff]
    %v66 = vld [vmem:[#allocation5 + $0x28] sm:$0xff]
    %v67 = vld [vmem:[#allocation5 + $0x30] sm:$0xff]
    %v68 = vld [vmem:[#allocation5 + $0x38] sm:$0xff]
    %v69 = vld [vmem:[#allocation5 + $0x40] sm:$0xff]
    %v70 = vld [vmem:[#allocation5 + $0x48] sm:$0xff]
    %v71 = vld [vmem:[#allocation5 + $0x50] sm:$0xff]
    %v72 = vld [vmem:[#allocation5 + $0x58] sm:$0xff]
    %v73 = vld [vmem:[#allocation5 + $0x60] sm:$0xff]
    %v74 = vld [vmem:[#allocation5 + $0x68] sm:$0xff]
    %v75 = vld [vmem:[#allocation5 + $0x70] sm:$0xff]
    %v76 = vld [vmem:[#allocation5 + $0x78] sm:$0xff]
    %v77 = vld [vmem:[%s2] sm:$0x1]
    %v79 = vlaneseq
    %v80 = vshrl.u32 %v79, 7
    %v81 = vsub.s32 0, %v80
    %v82 = vrot.slane %v77, %v81
    %84 = vmatprep.subr.mxu0 0.0
    %85 = vmatpush1.msra.mxu0 %v61
    %86 = vmatprep.subr.mxu0 0.0
    %87 = vmatpush1.msra.mxu0 %v62
    %88 = vmatprep.subr.mxu0 0.0
    %89 = vmatpush1.msra.mxu0 %v63
    %90 = vmatprep.subr.mxu0 0.0
    %91 = vmatpush1.msra.mxu0 %v64
    %92 = vmatprep.subr.mxu0 0.0
    %93 = vmatpush1.msra.mxu0 %v65
    %94 = vmatprep.subr.mxu0 0.0
    %95 = vmatpush1.msra.mxu0 %v66
    %96 = vmatprep.subr.mxu0 0.0
    %97 = vmatpush1.msra.mxu0 %v67
    %98 = vmatprep.subr.mxu0 0.0
    %99 = vmatpush1.msra.mxu0 %v68
    %100 = vmatprep.subr.mxu0 0.0
    %101 = vmatpush1.msra.mxu0 %v69
    %102 = vmatprep.subr.mxu0 0.0
    %103 = vmatpush1.msra.mxu0 %v70
    %104 = vmatprep.subr.mxu0 0.0
    %105 = vmatpush1.msra.mxu0 %v71
    %106 = vmatprep.subr.mxu0 0.0
    %107 = vmatpush1.msra.mxu0 %v72
    %108 = vmatprep.subr.mxu0 0.0
    %109 = vmatpush1.msra.mxu0 %v73
    %110 = vmatprep.subr.mxu0 0.0
    %111 = vmatpush1.msra.mxu0 %v74
    %112 = vmatprep.subr.mxu0 0.0
    %113 = vmatpush1.msra.mxu0 %v75
    %114 = vmatprep.subr.mxu0 0.0
    %115 = vmatpush1.msra.mxu0 %v76
    %116 = vmatprep.subr.mxu0 0.0
    %117 = vmatpush1.msra.mxu0 0.0
    %118 = vmatprep.subr.mxu0 0.0
    %119 = vmatpush1.msra.mxu0 0.0
    %120 = vmatprep.subr.mxu0 0.0
    %121 = vmatpush1.msra.mxu0 0.0
    %122 = vmatprep.subr.mxu0 0.0
    %123 = vmatpush1.msra.mxu0 0.0
    %124 = vmatprep.subr.mxu0 0.0
    %125 = vmatpush1.msra.mxu0 0.0
    %126 = vmatprep.subr.mxu0 0.0
    %127 = vmatpush1.msra.mxu0 0.0
    %128 = vmatprep.subr.mxu0 0.0
    %129 = vmatpush1.msra.mxu0 0.0
    %130 = vmatprep.subr.mxu0 0.0
    %131 = vmatpush1.msra.mxu0 0.0
    %132 = vmatprep.subr.mxu0 0.0
    %133 = vmatpush1.msra.mxu0 0.0
    %134 = vmatprep.subr.mxu0 0.0
    %135 = vmatpush1.msra.mxu0 0.0
    %136 = vmatprep.subr.mxu0 0.0
    %137 = vmatpush1.msra.mxu0 0.0
    %138 = vmatprep.subr.mxu0 0.0
    %139 = vmatpush1.msra.mxu0 0.0
    %140 = vmatprep.subr.mxu0 0.0
    %141 = vmatpush1.msra.mxu0 0.0
    %142 = vmatprep.subr.mxu0 0.0
    %143 = vmatpush1.msra.mxu0 0.0
    %144 = vmatprep.subr.mxu0 0.0
    %145 = vmatpush1.msra.mxu0 0.0
    %146 = vmatprep.subr.mxu0 0.0
    %147 = vmatpush1.msra.mxu0 0.0
    %148 = vmatprep.mubr.f32.mxu0 0.0
    %149 = vmatmul.mubr.f32.gmra.mrb[0].mxu0 %v60
    %v150 = vpop.f32.mrb[0].mxu0
    %v151 = vadd.f32 %v82, %v150
    %v152 = vpop.f32.mrb[0].mxu0
    %153 = vdwg.mxu0
    %v154 = vmax.f32 %v151, 0.0
    %v155 = vld [vmem:[#allocation7] sm:$0xff]
    %v156 = vld [vmem:[#allocation7 + $0x8] sm:$0xff]
    %v157 = vld [vmem:[#allocation7 + $0x10] sm:$0xff]
    %v158 = vld [vmem:[#allocation7 + $0x18] sm:$0xff]
    %v159 = vld [vmem:[#allocation7 + $0x20] sm:$0xff]
    %v160 = vld [vmem:[#allocation7 + $0x28] sm:$0xff]
    %v161 = vld [vmem:[#allocation7 + $0x30] sm:$0xff]
    %v162 = vld [vmem:[#allocation7 + $0x38] sm:$0xff]
    %v163 = vld [vmem:[#allocation7 + $0x40] sm:$0xff]
    %v164 = vld [vmem:[#allocation7 + $0x48] sm:$0xff]
    %v165 = vld [vmem:[#allocation7 + $0x50] sm:$0xff]
    %v166 = vld [vmem:[#allocation7 + $0x58] sm:$0xff]
    %v167 = vld [vmem:[#allocation7 + $0x60] sm:$0xff]
    %v168 = vld [vmem:[#allocation7 + $0x68] sm:$0xff]
    %v169 = vld [vmem:[#allocation7 + $0x70] sm:$0xff]
    %v170 = vld [vmem:[#allocation7 + $0x78] sm:$0xff]
    %v171 = vld [vmem:[%s4] sm:$0x1]
    %v173 = vlaneseq
    %v174 = vshrl.u32 %v173, 7
    %v175 = vsub.s32 0, %v174
    %v176 = vrot.slane %v171, %v175
    %178 = vmatprep.subr.mxu0 0.0
    %179 = vmatpush1.msra.mxu0 %v155
    %180 = vmatprep.subr.mxu0 0.0
    %181 = vmatpush1.msra.mxu0 %v156
    %182 = vmatprep.subr.mxu0 0.0
    %183 = vmatpush1.msra.mxu0 %v157
    %184 = vmatprep.subr.mxu0 0.0
    %185 = vmatpush1.msra.mxu0 %v158
    %186 = vmatprep.subr.mxu0 0.0
    %187 = vmatpush1.msra.mxu0 %v159
    %188 = vmatprep.subr.mxu0 0.0
    %189 = vmatpush1.msra.mxu0 %v160
    %190 = vmatprep.subr.mxu0 0.0
    %191 = vmatpush1.msra.mxu0 %v161
    %192 = vmatprep.subr.mxu0 0.0
    %193 = vmatpush1.msra.mxu0 %v162
    %194 = vmatprep.subr.mxu0 0.0
    %195 = vmatpush1.msra.mxu0 %v163
    %196 = vmatprep.subr.mxu0 0.0
    %197 = vmatpush1.msra.mxu0 %v164
    %198 = vmatprep.subr.mxu0 0.0
    %199 = vmatpush1.msra.mxu0 %v165
    %200 = vmatprep.subr.mxu0 0.0
    %201 = vmatpush1.msra.mxu0 %v166
    %202 = vmatprep.subr.mxu0 0.0
    %203 = vmatpush1.msra.mxu0 %v167
    %204 = vmatprep.subr.mxu0 0.0
    %205 = vmatpush1.msra.mxu0 %v168
    %206 = vmatprep.subr.mxu0 0.0
    %207 = vmatpush1.msra.mxu0 %v169
    %208 = vmatprep.subr.mxu0 0.0
    %209 = vmatpush1.msra.mxu0 %v170
    %210 = vmatprep.subr.mxu0 0.0
    %211 = vmatpush1.msra.mxu0 0.0
    %212 = vmatprep.subr.mxu0 0.0
    %213 = vmatpush1.msra.mxu0 0.0
    %214 = vmatprep.subr.mxu0 0.0
    %215 = vmatpush1.msra.mxu0 0.0
    %216 = vmatprep.subr.mxu0 0.0
    %217 = vmatpush1.msra.mxu0 0.0
    %218 = vmatprep.subr.mxu0 0.0
    %219 = vmatpush1.msra.mxu0 0.0
    %220 = vmatprep.subr.mxu0 0.0
    %221 = vmatpush1.msra.mxu0 0.0
    %222 = vmatprep.subr.mxu0 0.0
    %223 = vmatpush1.msra.mxu0 0.0
    %224 = vmatprep.subr.mxu0 0.0
    %225 = vmatpush1.msra.mxu0 0.0
    %226 = vmatprep.subr.mxu0 0.0
    %227 = vmatpush1.msra.mxu0 0.0
    %228 = vmatprep.subr.mxu0 0.0
    %229 = vmatpush1.msra.mxu0 0.0
    %230 = vmatprep.subr.mxu0 0.0
    %231 = vmatpush1.msra.mxu0 0.0
    %232 = vmatprep.subr.mxu0 0.0
    %233 = vmatpush1.msra.mxu0 0.0
    %234 = vmatprep.subr.mxu0 0.0
    %235 = vmatpush1.msra.mxu0 0.0
    %236 = vmatprep.subr.mxu0 0.0
    %237 = vmatpush1.msra.mxu0 0.0
    %238 = vmatprep.subr.mxu0 0.0
    %239 = vmatpush1.msra.mxu0 0.0
    %240 = vmatprep.subr.mxu0 0.0
    %241 = vmatpush1.msra.mxu0 0.0
    %242 = vmatprep.mubr.f32.mxu0 0.0
    %243 = vmatmul.mubr.f32.gmra.mrb[0].mxu0 %v154
    %v244 = vpop.f32.mrb[0].mxu0
    %v245 = vadd.f32 %v176, %v244
    %v246 = vpop.f32.mrb[0].mxu0
    %247 = vdwg.mxu0
    %v248 = vmax.f32 %v245, 0.0
    %249 = vst [vmem:[#allocation8] sm:$0xff] %v248
    // Predicated region
    $region34: #{tpu_custom_call.1} parent=1 // pred_check
      _
    $region35: #{tpu_custom_call.1} parent=1 // pred_check_branch
      %251 = sbr.rel (0) target = $region37
    $region36: #{tpu_custom_call.1} parent=1 // pred_region
      %s253 = ssub.s32 128, 128
      %254 = vsyncadd [#allocation4], %s253
      %s256 = sshll.u32 [#allocation8], 4
      %s257 = int_to_ptr.vmem [resolvable:$true] %s256
      %259 = dma.vmem_to_hbm [thread:$0]  %s257, 128, %s5, [#allocation4]
    $region37: #{tpu_custom_call.1} parent=1 // pred_fallthru
      _
    // Predicated region
    $region38: #{tpu_custom_call.1} parent=1 // pred_check
      _
    $region39: #{tpu_custom_call.1} parent=1 // pred_check_branch
      %261 = sbr.rel (0) target = $region41
    $region40: #{tpu_custom_call.1} parent=1 // pred_region
      %262 = dma.done [#allocation4], 128
    $region41: #{tpu_custom_call.1} parent=1 // pred_fallthru
      _
    %263 = vsyncpa [#allocation3], 1
    %264 = vsyncpa [#allocation6], 1
    %265 = vsyncpa [#allocation4], 1

// kernel: tpu_custom_call.1
$region0: #{tpu_custom_call.1}
  #allocation0 [shape = 'u32[]', space=smem, size = 0x4, offset = 0x4, fixed_abs, tag = 'smem constant byte address 0x4 - core index']
  #allocation1 [shape = 'u32[144,128]{1,0:T(1,128)}', space=vmem, size = 0x12000, scoped, tag = 'internal scratch']
  %s0 = inlined_call_operand.hbm [shape: f32[8,128], index: 0, kind: input, shape index: {}]
  %s1 = inlined_call_operand.hbm [shape: f32[128,128], index: 1, kind: input, shape index: {}]
  %s2 = inlined_call_operand.vmem [shape: f32[1,128], index: 2, kind: input, shape index: {}]
  %s3 = inlined_call_operand.hbm [shape: f32[128,128], index: 3, kind: input, shape index: {}]
  %s4 = inlined_call_operand.vmem [shape: f32[1,128], index: 4, kind: input, shape index: {}]
  %s5 = inlined_call_operand.hbm [shape: f32[8,128], index: 5, kind: output, shape index: {}]
  %s6 = sld [smem:[#allocation0]]
  $region42: #{tpu_custom_call.1} parent=0
    _
  %s8 = ssub.s32 1, %s6
  %s9 = scalar_select 0, %s8, %s6
  $region1: #{tpu_custom_call.1} parent=0
    #allocation2 [shape = 'u8[4096]{0}', space=vmem, size = 0x1000, scoped, tag = 'input window, operand 0, single buffered']
    #allocation3 [shape = 's32[1]{0}', space=sflag, size = 0x4, scoped, tag = 'scoped memory for tpu_custom_call.1']
    #allocation4 [shape = 's32[1]{0}', space=sflag, size = 0x4, scoped, tag = 'scoped memory for tpu_custom_call.1']
    #allocation5 [shape = 'u8[65536]{0}', space=vmem, size = 0x10000, scoped, tag = 'input window, operand 1, single buffered']
    #allocation6 [shape = 's32[1]{0}', space=sflag, size = 0x4, scoped, tag = 'scoped memory for tpu_custom_call.1']
    #allocation7 [shape = 'u8[65536]{0}', space=vmem, size = 0x10000, scoped, tag = 'input window, operand 3, single buffered']
    #allocation8 [shape = 'u8[4096]{0}', space=vmem, size = 0x1000, scoped, tag = 'output window, operand 0, single buffered']
    %10 = vsyncpa [#allocation3], 0
    %11 = vsyncpa [#allocation6], 0
    %12 = vsyncpa [#allocation4], 0
    // Predicated region
    $region2: #{tpu_custom_call.1} parent=1 // pred_check
      _
    $region3: #{tpu_custom_call.1} parent=1 // pred_check_branch
      %14 = sbr.rel (0) target = $region5
    $region4: #{tpu_custom_call.1} parent=1 // pred_region
      %s16 = ssub.s32 128, 128
      %17 = vsyncadd [#allocation3], %s16
      %s19 = sshll.u32 [#allocation2], 4
      %s20 = int_to_ptr.vmem [resolvable:$true] %s19
      %22 = dma.hbm_to_vmem [thread:$0]  %s0, 128, %s20, [#allocation3]
    $region5: #{tpu_custom_call.1} parent=1 // pred_fallthru
      _
    // Predicated region
    $region6: #{tpu_custom_call.1} parent=1 // pred_check
      _
    $region7: #{tpu_custom_call.1} parent=1 // pred_check_branch
      %24 = sbr.rel (0) target = $region9
    $region8: #{tpu_custom_call.1} parent=1 // pred_region
      %s26 = ssub.s32 2048, 2048
      %27 = vsyncadd [#allocation6], %s26
      %s28 = sshll.u32 [#allocation5], 4
      %s29 = int_to_ptr.vmem [resolvable:$true] %s28
      %34 = dma.hbm_to_vmem [thread:$0]  %s1, 2048, %s29, [#allocation6], 128, 128, 8
    $region9: #{tpu_custom_call.1} parent=1 // pred_fallthru
      _
    // Predicated region
    $region10: #{tpu_custom_call.1} parent=1 // pred_check
      _
    $region11: #{tpu_custom_call.1} parent=1 // pred_check_branch
      %36 = sbr.rel (0) target = $region13
    $region12: #{tpu_custom_call.1} parent=1 // pred_region
      _
    $region13: #{tpu_custom_call.1} parent=1 // pred_fallthru
      _
    // Predicated region
    $region14: #{tpu_custom_call.1} parent=1 // pred_check
      _
    $region15: #{tpu_custom_call.1} parent=1 // pred_check_branch
      %38 = sbr.rel (0) target = $region17
    $region16: #{tpu_custom_call.1} parent=1 // pred_region
      %s40 = ssub.s32 2048, 2048
      %41 = vsyncadd [#allocation6], %s40
      %s42 = sshll.u32 [#allocation7], 4
      %s43 = int_to_ptr.vmem [resolvable:$true] %s42
      %48 = dma.hbm_to_vmem [thread:$0]  %s3, 2048, %s43, [#allocation6], 128, 128, 8
    $region17: #{tpu_custom_call.1} parent=1 // pred_fallthru
      _
    // Predicated region
    $region18: #{tpu_custom_call.1} parent=1 // pred_check
      _
    $region19: #{tpu_custom_call.1} parent=1 // pred_check_branch
      %50 = sbr.rel (0) target = $region21
    $region20: #{tpu_custom_call.1} parent=1 // pred_region
      _
    $region21: #{tpu_custom_call.1} parent=1 // pred_fallthru
      _
    // Predicated region
    $region22: #{tpu_custom_call.1} parent=1 // pred_check
      _
    $region23: #{tpu_custom_call.1} parent=1 // pred_check_branch
      %52 = sbr.rel (0) target = $region25
    $region24: #{tpu_custom_call.1} parent=1 // pred_region
      %53 = dma.done [#allocation3], 128
    $region25: #{tpu_custom_call.1} parent=1 // pred_fallthru
      _
    // Predicated region
    $region26: #{tpu_custom_call.1} parent=1 // pred_check
      _
    $region27: #{tpu_custom_call.1} parent=1 // pred_check_branch
      %55 = sbr.rel (0) target = $region29
    $region28: #{tpu_custom_call.1} parent=1 // pred_region
      %56 = dma.done [#allocation6], 2048
    $region29: #{tpu_custom_call.1} parent=1 // pred_fallthru
      _
    // Predicated region
    $region30: #{tpu_custom_call.1} parent=1 // pred_check
      _
    $region31: #{tpu_custom_call.1} parent=1 // pred_check_branch
      %58 = sbr.rel (0) target = $region33
    $region32: #{tpu_custom_call.1} parent=1 // pred_region
      %59 = dma.done [#allocation6], 2048
    $region33: #{tpu_custom_call.1} parent=1 // pred_fallthru
      _
    %v60 = vld [vmem:[#allocation2] sm:$0xff]
    %v61 = vld [vmem:[#allocation5] sm:$0xff]
    %v62 = vld [vmem:[#allocation5 + $0x8] sm:$0xff]
    %v63 = vld [vmem:[#allocation5 + $0x10] sm:$0xff]
    %v64 = vld [vmem:[#allocation5 + $0x18] sm:$0xff]
    %v65 = vld [vmem:[#allocation5 + $0x20] sm:$0xff]
    %v66 = vld [vmem:[#allocation5 + $0x28] sm:$0xff]
    %v67 = vld [vmem:[#allocation5 + $0x30] sm:$0xff]
    %v68 = vld [vmem:[#allocation5 + $0x38] sm:$0xff]
    %v69 = vld [vmem:[#allocation5 + $0x40] sm:$0xff]
    %v70 = vld [vmem:[#allocation5 + $0x48] sm:$0xff]
    %v71 = vld [vmem:[#allocation5 + $0x50] sm:$0xff]
    %v72 = vld [vmem:[#allocation5 + $0x58] sm:$0xff]
    %v73 = vld [vmem:[#allocation5 + $0x60] sm:$0xff]
    %v74 = vld [vmem:[#allocation5 + $0x68] sm:$0xff]
    %v75 = vld [vmem:[#allocation5 + $0x70] sm:$0xff]
    %v76 = vld [vmem:[#allocation5 + $0x78] sm:$0xff]
    %v77 = vld [vmem:[%s2] sm:$0x1]
    %v79 = vlaneseq
    %v80 = vshrl.u32 %v79, 7
    %v81 = vsub.s32 0, %v80
    %v82 = vrot.slane %v77, %v81
    %84 = vmatprep.subr.mxu0 0.0
    %85 = vmatpush1.msra.mxu0 %v61
    %86 = vmatprep.subr.mxu0 0.0
    %87 = vmatpush1.msra.mxu0 %v62
    %88 = vmatprep.subr.mxu0 0.0
    %89 = vmatpush1.msra.mxu0 %v63
    %90 = vmatprep.subr.mxu0 0.0
    %91 = vmatpush1.msra.mxu0 %v64
    %92 = vmatprep.subr.mxu0 0.0
    %93 = vmatpush1.msra.mxu0 %v65
    %94 = vmatprep.subr.mxu0 0.0
    %95 = vmatpush1.msra.mxu0 %v66
    %96 = vmatprep.subr.mxu0 0.0
    %97 = vmatpush1.msra.mxu0 %v67
    %98 = vmatprep.subr.mxu0 0.0
    %99 = vmatpush1.msra.mxu0 %v68
    %100 = vmatprep.subr.mxu0 0.0
    %101 = vmatpush1.msra.mxu0 %v69
    %102 = vmatprep.subr.mxu0 0.0
    %103 = vmatpush1.msra.mxu0 %v70
    %104 = vmatprep.subr.mxu0 0.0
    %105 = vmatpush1.msra.mxu0 %v71
    %106 = vmatprep.subr.mxu0 0.0
    %107 = vmatpush1.msra.mxu0 %v72
    %108 = vmatprep.subr.mxu0 0.0
    %109 = vmatpush1.msra.mxu0 %v73
    %110 = vmatprep.subr.mxu0 0.0
    %111 = vmatpush1.msra.mxu0 %v74
    %112 = vmatprep.subr.mxu0 0.0
    %113 = vmatpush1.msra.mxu0 %v75
    %114 = vmatprep.subr.mxu0 0.0
    %115 = vmatpush1.msra.mxu0 %v76
    %116 = vmatprep.subr.mxu0 0.0
    %117 = vmatpush1.msra.mxu0 0.0
    %118 = vmatprep.subr.mxu0 0.0
    %119 = vmatpush1.msra.mxu0 0.0
    %120 = vmatprep.subr.mxu0 0.0
    %121 = vmatpush1.msra.mxu0 0.0
    %122 = vmatprep.subr.mxu0 0.0
    %123 = vmatpush1.msra.mxu0 0.0
    %124 = vmatprep.subr.mxu0 0.0
    %125 = vmatpush1.msra.mxu0 0.0
    %126 = vmatprep.subr.mxu0 0.0
    %127 = vmatpush1.msra.mxu0 0.0
    %128 = vmatprep.subr.mxu0 0.0
    %129 = vmatpush1.msra.mxu0 0.0
    %130 = vmatprep.subr.mxu0 0.0
    %131 = vmatpush1.msra.mxu0 0.0
    %132 = vmatprep.subr.mxu0 0.0
    %133 = vmatpush1.msra.mxu0 0.0
    %134 = vmatprep.subr.mxu0 0.0
    %135 = vmatpush1.msra.mxu0 0.0
    %136 = vmatprep.subr.mxu0 0.0
    %137 = vmatpush1.msra.mxu0 0.0
    %138 = vmatprep.subr.mxu0 0.0
    %139 = vmatpush1.msra.mxu0 0.0
    %140 = vmatprep.subr.mxu0 0.0
    %141 = vmatpush1.msra.mxu0 0.0
    %142 = vmatprep.subr.mxu0 0.0
    %143 = vmatpush1.msra.mxu0 0.0
    %144 = vmatprep.subr.mxu0 0.0
    %145 = vmatpush1.msra.mxu0 0.0
    %146 = vmatprep.subr.mxu0 0.0
    %147 = vmatpush1.msra.mxu0 0.0
    %148 = vmatprep.mubr.f32.mxu0 0.0
    %149 = vmatmul.mubr.f32.gmra.mrb[0].mxu0 %v60
    %v150 = vpop.f32.mrb[0].mxu0
    %v151 = vadd.f32 %v82, %v150
    %v152 = vpop.f32.mrb[0].mxu0
    %153 = vdwg.mxu0
    %v154 = vmax.f32 %v151, 0.0
    %v155 = vld [vmem:[#allocation7] sm:$0xff]
    %v156 = vld [vmem:[#allocation7 + $0x8] sm:$0xff]
    %v157 = vld [vmem:[#allocation7 + $0x10] sm:$0xff]
    %v158 = vld [vmem:[#allocation7 + $0x18] sm:$0xff]
    %v159 = vld [vmem:[#allocation7 + $0x20] sm:$0xff]
    %v160 = vld [vmem:[#allocation7 + $0x28] sm:$0xff]
    %v161 = vld [vmem:[#allocation7 + $0x30] sm:$0xff]
    %v162 = vld [vmem:[#allocation7 + $0x38] sm:$0xff]
    %v163 = vld [vmem:[#allocation7 + $0x40] sm:$0xff]
    %v164 = vld [vmem:[#allocation7 + $0x48] sm:$0xff]
    %v165 = vld [vmem:[#allocation7 + $0x50] sm:$0xff]
    %v166 = vld [vmem:[#allocation7 + $0x58] sm:$0xff]
    %v167 = vld [vmem:[#allocation7 + $0x60] sm:$0xff]
    %v168 = vld [vmem:[#allocation7 + $0x68] sm:$0xff]
    %v169 = vld [vmem:[#allocation7 + $0x70] sm:$0xff]
    %v170 = vld [vmem:[#allocation7 + $0x78] sm:$0xff]
    %v171 = vld [vmem:[%s4] sm:$0x1]
    %v173 = vlaneseq
    %v174 = vshrl.u32 %v173, 7
    %v175 = vsub.s32 0, %v174
    %v176 = vrot.slane %v171, %v175
    %178 = vmatprep.subr.mxu0 0.0
    %179 = vmatpush1.msra.mxu0 %v155
    %180 = vmatprep.subr.mxu0 0.0
    %181 = vmatpush1.msra.mxu0 %v156
    %182 = vmatprep.subr.mxu0 0.0
    %183 = vmatpush1.msra.mxu0 %v157
    %184 = vmatprep.subr.mxu0 0.0
    %185 = vmatpush1.msra.mxu0 %v158
    %186 = vmatprep.subr.mxu0 0.0
    %187 = vmatpush1.msra.mxu0 %v159
    %188 = vmatprep.subr.mxu0 0.0
    %189 = vmatpush1.msra.mxu0 %v160
    %190 = vmatprep.subr.mxu0 0.0
    %191 = vmatpush1.msra.mxu0 %v161
    %192 = vmatprep.subr.mxu0 0.0
    %193 = vmatpush1.msra.mxu0 %v162
    %194 = vmatprep.subr.mxu0 0.0
    %195 = vmatpush1.msra.mxu0 %v163
    %196 = vmatprep.subr.mxu0 0.0
    %197 = vmatpush1.msra.mxu0 %v164
    %198 = vmatprep.subr.mxu0 0.0
    %199 = vmatpush1.msra.mxu0 %v165
    %200 = vmatprep.subr.mxu0 0.0
    %201 = vmatpush1.msra.mxu0 %v166
    %202 = vmatprep.subr.mxu0 0.0
    %203 = vmatpush1.msra.mxu0 %v167
    %204 = vmatprep.subr.mxu0 0.0
    %205 = vmatpush1.msra.mxu0 %v168
    %206 = vmatprep.subr.mxu0 0.0
    %207 = vmatpush1.msra.mxu0 %v169
    %208 = vmatprep.subr.mxu0 0.0
    %209 = vmatpush1.msra.mxu0 %v170
    %210 = vmatprep.subr.mxu0 0.0
    %211 = vmatpush1.msra.mxu0 0.0
    %212 = vmatprep.subr.mxu0 0.0
    %213 = vmatpush1.msra.mxu0 0.0
    %214 = vmatprep.subr.mxu0 0.0
    %215 = vmatpush1.msra.mxu0 0.0
    %216 = vmatprep.subr.mxu0 0.0
    %217 = vmatpush1.msra.mxu0 0.0
    %218 = vmatprep.subr.mxu0 0.0
    %219 = vmatpush1.msra.mxu0 0.0
    %220 = vmatprep.subr.mxu0 0.0
    %221 = vmatpush1.msra.mxu0 0.0
    %222 = vmatprep.subr.mxu0 0.0
    %223 = vmatpush1.msra.mxu0 0.0
    %224 = vmatprep.subr.mxu0 0.0
    %225 = vmatpush1.msra.mxu0 0.0
    %226 = vmatprep.subr.mxu0 0.0
    %227 = vmatpush1.msra.mxu0 0.0
    %228 = vmatprep.subr.mxu0 0.0
    %229 = vmatpush1.msra.mxu0 0.0
    %230 = vmatprep.subr.mxu0 0.0
    %231 = vmatpush1.msra.mxu0 0.0
    %232 = vmatprep.subr.mxu0 0.0
    %233 = vmatpush1.msra.mxu0 0.0
    %234 = vmatprep.subr.mxu0 0.0
    %235 = vmatpush1.msra.mxu0 0.0
    %236 = vmatprep.subr.mxu0 0.0
    %237 = vmatpush1.msra.mxu0 0.0
    %238 = vmatprep.subr.mxu0 0.0
    %239 = vmatpush1.msra.mxu0 0.0
    %240 = vmatprep.subr.mxu0 0.0
    %241 = vmatpush1.msra.mxu0 0.0
    %242 = vmatprep.mubr.f32.mxu0 0.0
    %243 = vmatmul.mubr.f32.gmra.mrb[0].mxu0 %v154
    %v244 = vpop.f32.mrb[0].mxu0
    %v245 = vadd.f32 %v176, %v244
    %v246 = vpop.f32.mrb[0].mxu0
    %247 = vdwg.mxu0
    %v248 = vmax.f32 %v245, 0.0
    %249 = vst [vmem:[#allocation8] sm:$0xff] %v248
    // Predicated region
    $region34: #{tpu_custom_call.1} parent=1 // pred_check
      _
    $region35: #{tpu_custom_call.1} parent=1 // pred_check_branch
      %251 = sbr.rel (0) target = $region37
    $region36: #{tpu_custom_call.1} parent=1 // pred_region
      %s253 = ssub.s32 128, 128
      %254 = vsyncadd [#allocation4], %s253
      %s256 = sshll.u32 [#allocation8], 4
      %s257 = int_to_ptr.vmem [resolvable:$true] %s256
      %259 = dma.vmem_to_hbm [thread:$0]  %s257, 128, %s5, [#allocation4]
    $region37: #{tpu_custom_call.1} parent=1 // pred_fallthru
      _
    // Predicated region
    $region38: #{tpu_custom_call.1} parent=1 // pred_check
      _
    $region39: #{tpu_custom_call.1} parent=1 // pred_check_branch
      %261 = sbr.rel (0) target = $region41
    $region40: #{tpu_custom_call.1} parent=1 // pred_region
      %262 = dma.done [#allocation4], 128
    $region41: #{tpu_custom_call.1} parent=1 // pred_fallthru
      _
    %263 = vsyncpa [#allocation3], 1
    %264 = vsyncpa [#allocation6], 1
    %265 = vsyncpa [#allocation4], 1

</llo_original>
